<compile_context>
chip_gen: v7x
topology: tpu7x:2x2x1
jax: 0.10.0
libtpu: 0.0.40
codegen_flags: <defaults>
</compile_context>

<pallas_src>
import functools

import jax
import jax.numpy as jnp
from jax.experimental import pallas as pl
from jax.experimental.pallas import tpu as pltpu


def _round_up(n, m):
    return ((n + m - 1) // m) * m


def _cdiv(a, b):
    return (a + b - 1) // b


def _pad2(a, rows, cols):
    return jnp.pad(a, ((0, rows - a.shape[0]), (0, cols - a.shape[1])))


def _softplus(x):
    # Numerically stable softplus: max(x,0) + log1p(exp(-|x|)).
    return jnp.maximum(x, 0.0) + jnp.log1p(jnp.exp(-jnp.abs(x)))


def encoder_kernel(x_ref, w1_ref, b1_ref, wh_ref, bh_ref, out_ref, *,
                   z_dim, out_p):
    x = x_ref[...]                                            # (tb, obs_p)
    # fc1 + softplus (MXU accumulate in f32, elementwise math in f32).
    h = jnp.dot(x, w1_ref[...], preferred_element_type=jnp.float32) + b1_ref[...]
    h = _softplus(h)                                          # (tb, hid_p) f32
    # Fused head matmul: one dot produces [z_loc | z_scale_logits | pad].
    h = h.astype(wh_ref.dtype)
    y = jnp.dot(h, wh_ref[...], preferred_element_type=jnp.float32) + bh_ref[...]

    # exp() only on 128-lane column groups that actually contain z_scale lanes
    # (lanes [z_dim, 2*z_dim)); everything else passes through untouched.
    first_grp = z_dim // 128
    last_grp = (2 * z_dim - 1) // 128
    pieces = []
    for g in range(out_p // 128):
        lo, hi = g * 128, (g + 1) * 128
        yg = y[:, lo:hi]
        if first_grp <= g <= last_grp:
            if lo >= z_dim and hi <= 2 * z_dim:
                yg = jnp.exp(yg)                              # whole group is scale
            else:
                lane = jax.lax.broadcasted_iota(jnp.int32, yg.shape, 1) + lo
                is_scale = (lane >= z_dim) & (lane < 2 * z_dim)
                yg = jnp.where(is_scale, jnp.exp(yg), yg)
        pieces.append(yg)
    y = pieces[0] if len(pieces) == 1 else jnp.concatenate(pieces, axis=1)
    out_ref[...] = y.astype(out_ref.dtype)                    # lane-dense store


def pack_params(params, *, compute_dtype=jnp.float32):
    """One-time packing: pad feature dims to 128 lanes, fuse the two heads.

    params: dict with w1 (obs,hid), b1 (1,hid), w21/w22 (hid,z), b21/b22 (1,z)
    (weights stored pre-transposed as (in, out)).
    """
    obs_dim, hidden_dim = params["w1"].shape
    z_dim = params["w21"].shape[1]
    obs_p = _round_up(obs_dim, 128)
    hid_p = _round_up(hidden_dim, 128)
    out_p = _round_up(2 * z_dim, 128)
    # Zero padding is semantically safe: padded rows/cols of the weights are
    # zero, so padded obs / hidden lanes never contribute to real outputs
    # (padded hidden lanes give softplus(0)=ln2 but hit zero head-weight rows).
    wh = jnp.concatenate([params["w21"], params["w22"]], axis=1)
    bh = jnp.concatenate([params["b21"], params["b22"]], axis=1)
    return {
        "w1": _pad2(params["w1"], obs_p, hid_p).astype(compute_dtype),
        "b1": _pad2(params["b1"], 1, hid_p).astype(jnp.float32),
        "wh": _pad2(wh, hid_p, out_p).astype(compute_dtype),
        "bh": _pad2(bh, 1, out_p).astype(jnp.float32),
        "dims": (obs_dim, hidden_dim, z_dim, obs_p, hid_p, out_p),
        "compute_dtype": jnp.dtype(compute_dtype),
    }


def encoder_forward(x, packed, *, tb=512, out_dtype=jnp.float32):
    """x: (B, obs_dim) float32. packed: output of pack_params().

    Returns (z_loc, z_scale), each (B, z_dim) in out_dtype.
    """
    obs_dim, hidden_dim, z_dim, obs_p, hid_p, out_p = packed["dims"]
    compute_dtype = packed["compute_dtype"]
    B = x.shape[0]
    assert x.shape[1] == obs_dim

    isz = jnp.dtype(compute_dtype).itemsize
    out_isz = jnp.dtype(out_dtype).itemsize
    sub = 16 if isz < 4 else 8            # min sublane tile: f32=8, bf16=16

    # Batch tile: multiple of the dtype sublane tile, capped by the batch.
    tb_eff = max(sub, min(_round_up(tb, sub), _round_up(B, sub)))
    n_tiles = _cdiv(B, tb_eff)
    # Keep multi-tile grids even so v7x's 2 TensorCores split evenly
    # (harmless single-TC on v5e/v6e).
    if n_tiles > 1 and n_tiles % 2 == 1:
        n_tiles += 1
        tb_eff = max(sub, _round_up(_cdiv(B, n_tiles), sub))
        n_tiles = max(2, _cdiv(B, tb_eff))
        if n_tiles % 2 == 1:
            n_tiles += 1
    B_p = n_tiles * tb_eff

    x_p = _pad2(x, B_p, obs_p).astype(compute_dtype)

    # VMEM budget: double-buffered x/out tiles, single-buffered weights,
    # f32 h + compute-dtype copy of h + f32 y intermediates, plus margin.
    vmem_bytes = (2 * tb_eff * obs_p * isz            # x tiles (double-buffered)
                  + 2 * tb_eff * out_p * out_isz      # out tiles (double-buffered)
                  + (obs_p * hid_p + hid_p * out_p) * isz   # weights (Buffered(1))
                  + (hid_p + out_p) * 4               # biases (Buffered(1))
                  + tb_eff * hid_p * (4 + isz)        # h (f32) + cast copy
                  + tb_eff * out_p * 4)               # y (f32)
    try:
        vmem_cap = int(pltpu.get_tpu_info().vmem_capacity_bytes)
    except Exception:  # fall back to the smallest generation (v7x: 64 MiB)
        vmem_cap = 64 * 1024 * 1024
    vmem_limit = int(min(max(int(vmem_bytes * 1.3) + (1 << 20), 4 << 20),
                         int(vmem_cap * 3) // 4))

    resident = lambda shape: pl.BlockSpec(shape, lambda i: (0, 0),
                                          pipeline_mode=pl.Buffered(1))

    out = pl.pallas_call(
        functools.partial(encoder_kernel, z_dim=z_dim, out_p=out_p),
        out_shape=jax.ShapeDtypeStruct((B_p, out_p), out_dtype),
        grid_spec=pltpu.PrefetchScalarGridSpec(
            num_scalar_prefetch=0,
            grid=(n_tiles,),
            in_specs=[
                pl.BlockSpec((tb_eff, obs_p), lambda i: (i, 0)),   # x tile
                resident((obs_p, hid_p)),                          # W1
                resident((1, hid_p)),                              # b1
                resident((hid_p, out_p)),                          # [W21|W22]
                resident((1, out_p)),                              # [b21|b22]
            ],
            out_specs=pl.BlockSpec((tb_eff, out_p), lambda i: (i, 0)),
        ),
        compiler_params=pltpu.CompilerParams(
            dimension_semantics=("parallel",),
            vmem_limit_bytes=vmem_limit),
    )(x_p, packed["w1"], packed["b1"], packed["wh"], packed["bh"])

    z_loc = out[:B, :z_dim]
    z_scale = out[:B, z_dim:2 * z_dim]
    return z_loc, z_scale


def init_params(key, obs_dim, hidden_dim, z_dim):
    """Deterministic synthetic params (stored pre-transposed: (in, out))."""
    k1, k2, k3, k4, k5, k6 = jax.random.split(key, 6)
    s1 = 1.0 / jnp.sqrt(obs_dim)
    s2 = 1.0 / jnp.sqrt(hidden_dim)
    return {
        "w1":  jax.random.uniform(k1, (obs_dim, hidden_dim), jnp.float32, -s1, s1),
        "b1":  jax.random.uniform(k2, (1, hidden_dim), jnp.float32, -s1, s1),
        "w21": jax.random.uniform(k3, (hidden_dim, z_dim), jnp.float32, -s2, s2),
        "b21": jax.random.uniform(k4, (1, z_dim), jnp.float32, -s2, s2),
        "w22": jax.random.uniform(k5, (hidden_dim, z_dim), jnp.float32, -s2, s2),
        "b22": jax.random.uniform(k6, (1, z_dim), jnp.float32, -s2, s2),
    }


def encoder_reference(x, p):
    h = jax.nn.softplus(x @ p["w1"] + p["b1"])
    return h @ p["w21"] + p["b21"], jnp.exp(h @ p["w22"] + p["b22"])


if __name__ == "__main__":
    key = jax.random.PRNGKey(0)
    kx, kp, kx2 = jax.random.split(key, 3)

    batch, obs_dim, hidden_dim, z_dim = 8, 32, 32, 16
    params = init_params(kp, obs_dim, hidden_dim, z_dim)

    # --- f32 path, small batch (single tile, grid length 1) ---
    packed_f32 = pack_params(params, compute_dtype=jnp.float32)
    x = jax.random.normal(kx, (batch, obs_dim), jnp.float32)
    z_loc, z_scale = encoder_forward(x, packed_f32)
    jax.block_until_ready((z_loc, z_scale))
    ref_loc, ref_scale = encoder_reference(x, params)
    assert jnp.allclose(z_loc, ref_loc, atol=1e-5, rtol=1e-5)
    assert jnp.allclose(z_scale, ref_scale, atol=1e-5, rtol=1e-5)

    # --- bf16 compute path, ragged batch -> padded, even multi-step grid,
    #     bf16 fused output slab (halves output HBM traffic) ---
    packed_bf16 = pack_params(params, compute_dtype=jnp.bfloat16)
    x2 = jax.random.normal(kx2, (48, obs_dim), jnp.float32)
    z_loc2, z_scale2 = encoder_forward(x2, packed_bf16, tb=16,
                                       out_dtype=jnp.bfloat16)
    jax.block_until_ready((z_loc2, z_scale2))
    ref_loc2, ref_scale2 = encoder_reference(x2, params)
    assert jnp.allclose(z_loc2.astype(jnp.float32), ref_loc2,
                        atol=4e-2, rtol=4e-2)
    assert jnp.allclose(z_scale2.astype(jnp.float32), ref_scale2,
                        atol=4e-2, rtol=4e-2)

    print("KERNEL_OK")
</pallas_src>

<mosaic_0001>
module attributes {stable_mosaic.version = 11 : i64} {
  func.func @encoder_kernel(%arg0: i32, %arg1: memref<8x128xf32, #tpu.memory_space<vmem>>, %arg2: memref<128x128xf32, #tpu.memory_space<vmem>>, %arg3: memref<1x128xf32, #tpu.memory_space<vmem>>, %arg4: memref<128x128xf32, #tpu.memory_space<vmem>>, %arg5: memref<1x128xf32, #tpu.memory_space<vmem>>, %arg6: memref<8x128xf32, #tpu.memory_space<vmem>>) attributes {dimension_semantics = [#tpu.dimension_semantics<parallel>], iteration_bounds = array<i64: 1>, scalar_prefetch = 0 : i64, scratch_operands = 0 : i64, tpu.core_type = #tpu.core_type<tc>, window_params = [{transform_indices = @transform_0, window_bounds = array<i64: 8, 128>}, {pipeline_mode = #tpu.pipeline_mode<synchronous>, transform_indices = @transform_1, window_bounds = array<i64: 128, 128>}, {pipeline_mode = #tpu.pipeline_mode<synchronous>, transform_indices = @transform_2, window_bounds = array<i64: 1, 128>}, {pipeline_mode = #tpu.pipeline_mode<synchronous>, transform_indices = @transform_3, window_bounds = array<i64: 128, 128>}, {pipeline_mode = #tpu.pipeline_mode<synchronous>, transform_indices = @transform_4, window_bounds = array<i64: 1, 128>}, {transform_indices = @transform_5, window_bounds = array<i64: 8, 128>}]} {
    %c0 = arith.constant 0 : index
    %c0_0 = arith.constant 0 : index
    %0 = vector.load %arg1[%c0, %c0_0] : memref<8x128xf32, #tpu.memory_space<vmem>>, vector<8x128xf32>
    %c0_1 = arith.constant 0 : index
    %c0_2 = arith.constant 0 : index
    %1 = vector.load %arg2[%c0_1, %c0_2] : memref<128x128xf32, #tpu.memory_space<vmem>>, vector<128x128xf32>
    %cst = arith.constant dense<0.000000e+00> : vector<8x128xf32>
    %2 = tpu.matmul %0, %1, %cst {dimension_numbers = #tpu.dot_dimension_numbers<[1], [0], [0], [1], [0, 0, 1, 1], [], []>} : vector<8x128xf32>, vector<128x128xf32>, vector<8x128xf32> -> vector<8x128xf32>
    %c0_3 = arith.constant 0 : index
    %c0_4 = arith.constant 0 : index
    %3 = vector.load %arg3[%c0_3, %c0_4] : memref<1x128xf32, #tpu.memory_space<vmem>>, vector<1x128xf32>
    %4 = vector.broadcast %3 : vector<1x128xf32> to vector<8x128xf32>
    %5 = arith.addf %2, %4 : vector<8x128xf32>
    %cst_5 = arith.constant 0.000000e+00 : f32
    %6 = vector.broadcast %cst_5 : f32 to vector<8x128xf32>
    %7 = arith.maximumf %5, %6 : vector<8x128xf32>
    %8 = math.absf %5 : vector<8x128xf32>
    %cst_6 = arith.constant 0.000000e+00 : f32
    %9 = vector.broadcast %cst_6 : f32 to vector<8x128xf32>
    %10 = arith.subf %9, %8 : vector<8x128xf32>
    %11 = math.exp %10 : vector<8x128xf32>
    %12 = math.log1p %11 : vector<8x128xf32>
    %13 = arith.addf %7, %12 : vector<8x128xf32>
    %c0_7 = arith.constant 0 : index
    %c0_8 = arith.constant 0 : index
    %14 = vector.load %arg4[%c0_7, %c0_8] : memref<128x128xf32, #tpu.memory_space<vmem>>, vector<128x128xf32>
    %cst_9 = arith.constant dense<0.000000e+00> : vector<8x128xf32>
    %15 = tpu.matmul %13, %14, %cst_9 {dimension_numbers = #tpu.dot_dimension_numbers<[1], [0], [0], [1], [0, 0, 1, 1], [], []>} : vector<8x128xf32>, vector<128x128xf32>, vector<8x128xf32> -> vector<8x128xf32>
    %c0_10 = arith.constant 0 : index
    %c0_11 = arith.constant 0 : index
    %16 = vector.load %arg5[%c0_10, %c0_11] : memref<1x128xf32, #tpu.memory_space<vmem>>, vector<1x128xf32>
    %17 = vector.broadcast %16 : vector<1x128xf32> to vector<8x128xf32>
    %18 = arith.addf %15, %17 : vector<8x128xf32>
    %19 = tpu.iota {dimensions = array<i32: 1>} : vector<8x128xi32>
    %c0_i32 = arith.constant 0 : i32
    %20 = vector.broadcast %c0_i32 : i32 to vector<8x128xi32>
    %21 = arith.addi %19, %20 : vector<8x128xi32>
    %c16_i32 = arith.constant 16 : i32
    %22 = vector.broadcast %c16_i32 : i32 to vector<8x128xi32>
    %23 = arith.cmpi sge, %21, %22 : vector<8x128xi32>
    %c32_i32 = arith.constant 32 : i32
    %24 = vector.broadcast %c32_i32 : i32 to vector<8x128xi32>
    %25 = arith.cmpi slt, %21, %24 : vector<8x128xi32>
    %26 = arith.andi %23, %25 : vector<8x128xi1>
    %27 = math.exp %18 : vector<8x128xf32>
    %28 = arith.select %26, %27, %18 : vector<8x128xi1>, vector<8x128xf32>
    %c0_12 = arith.constant 0 : index
    %c0_13 = arith.constant 0 : index
    %29 = vector.load %arg6[%c0_12, %c0_13] : memref<8x128xf32, #tpu.memory_space<vmem>>, vector<8x128xf32>
    tpu.vector_store %arg6[%c0_12, %c0_13], %28 {strides = array<i32>} : memref<8x128xf32, #tpu.memory_space<vmem>>, vector<8x128xf32>,
    return
  }
  func.func @transform_0(%arg0: i32) -> (i32, i32) {
    %c0_i32 = arith.constant 0 : i32
    %c0_i32_0 = arith.constant 0 : i32
    return %arg0, %c0_i32 : i32, i32
  }
  func.func @transform_1(%arg0: i32) -> (i32, i32) {
    %c0_i32 = arith.constant 0 : i32
    %c0_i32_0 = arith.constant 0 : i32
    %c0_i32_1 = arith.constant 0 : i32
    return %c0_i32, %c0_i32_0 : i32, i32
  }
  func.func @transform_2(%arg0: i32) -> (i32, i32) {
    %c0_i32 = arith.constant 0 : i32
    %c0_i32_0 = arith.constant 0 : i32
    %c0_i32_1 = arith.constant 0 : i32
    return %c0_i32, %c0_i32_0 : i32, i32
  }
  func.func @transform_3(%arg0: i32) -> (i32, i32) {
    %c0_i32 = arith.constant 0 : i32
    %c0_i32_0 = arith.constant 0 : i32
    %c0_i32_1 = arith.constant 0 : i32
    return %c0_i32, %c0_i32_0 : i32, i32
  }
  func.func @transform_4(%arg0: i32) -> (i32, i32) {
    %c0_i32 = arith.constant 0 : i32
    %c0_i32_0 = arith.constant 0 : i32
    %c0_i32_1 = arith.constant 0 : i32
    return %c0_i32, %c0_i32_0 : i32, i32
  }
  func.func @transform_5(%arg0: i32) -> (i32, i32) {
    %c0_i32 = arith.constant 0 : i32
    %c0_i32_0 = arith.constant 0 : i32
    return %arg0, %c0_i32 : i32, i32
  }
}

</mosaic_0001>

<llo_original>
// kernel: tpu_custom_call.1
$region0: #{tpu_custom_call.1}
  #allocation0 [shape = 'u32[]', space=smem, size = 0x4, offset = 0x4, fixed_abs, tag = 'smem constant byte address 0x4 - core index']
  #allocation1 [shape = 'u32[144,128]{1,0:T(1,128)}', space=vmem, size = 0x12000, scoped, tag = 'internal scratch']
  %s0 = inlined_call_operand.hbm [shape: f32[8,128], index: 0, kind: input, shape index: {}]
  %s1 = inlined_call_operand.hbm [shape: f32[128,128], index: 1, kind: input, shape index: {}]
  %s2 = inlined_call_operand.vmem [shape: f32[1,128], index: 2, kind: input, shape index: {}]
  %s3 = inlined_call_operand.hbm [shape: f32[128,128], index: 3, kind: input, shape index: {}]
  %s4 = inlined_call_operand.vmem [shape: f32[1,128], index: 4, kind: input, shape index: {}]
  %s5 = inlined_call_operand.hbm [shape: f32[8,128], index: 5, kind: output, shape index: {}]
  %s6 = sld [smem:[#allocation0]]
  $region42: #{tpu_custom_call.1} parent=0
    _
  %s8 = ssub.s32 1, %s6
  %s9 = scalar_select 0, %s8, %s6
  $region1: #{tpu_custom_call.1} parent=0
    #allocation2 [shape = 'u8[4096]{0}', space=vmem, size = 0x1000, scoped, tag = 'input window, operand 0, single buffered']
    #allocation3 [shape = 's32[1]{0}', space=sflag, size = 0x4, scoped, tag = 'scoped memory for tpu_custom_call.1']
    #allocation4 [shape = 's32[1]{0}', space=sflag, size = 0x4, scoped, tag = 'scoped memory for tpu_custom_call.1']
    #allocation5 [shape = 'u8[65536]{0}', space=vmem, size = 0x10000, scoped, tag = 'input window, operand 1, single buffered']
    #allocation6 [shape = 's32[1]{0}', space=sflag, size = 0x4, scoped, tag = 'scoped memory for tpu_custom_call.1']
    #allocation7 [shape = 'u8[65536]{0}', space=vmem, size = 0x10000, scoped, tag = 'input window, operand 3, single buffered']
    #allocation8 [shape = 'u8[4096]{0}', space=vmem, size = 0x1000, scoped, tag = 'output window, operand 0, single buffered']
    %10 = vsyncpa [#allocation3], 0
    %11 = vsyncpa [#allocation6], 0
    %12 = vsyncpa [#allocation4], 0
    // Predicated region
    $region2: #{tpu_custom_call.1} parent=1 // pred_check
      _
    $region3: #{tpu_custom_call.1} parent=1 // pred_check_branch
      %14 = sbr.rel (0) target = $region5
    $region4: #{tpu_custom_call.1} parent=1 // pred_region
      %s16 = ssub.s32 128, 128
      %17 = vsyncadd [#allocation3], %s16
      %s19 = sshll.u32 [#allocation2], 4
      %s20 = int_to_ptr.vmem [resolvable:$true] %s19
      %22 = dma.hbm_to_vmem [thread:$0]  %s0, 128, %s20, [#allocation3]
    $region5: #{tpu_custom_call.1} parent=1 // pred_fallthru
      _
    // Predicated region
    $region6: #{tpu_custom_call.1} parent=1 // pred_check
      _
    $region7: #{tpu_custom_call.1} parent=1 // pred_check_branch
      %24 = sbr.rel (0) target = $region9
    $region8: #{tpu_custom_call.1} parent=1 // pred_region
      %s26 = ssub.s32 2048, 2048
      %27 = vsyncadd [#allocation6], %s26
      %s28 = sshll.u32 [#allocation5], 4
      %s29 = int_to_ptr.vmem [resolvable:$true] %s28
      %34 = dma.hbm_to_vmem [thread:$0]  %s1, 2048, %s29, [#allocation6], 128, 128, 8
    $region9: #{tpu_custom_call.1} parent=1 // pred_fallthru
      _
    // Predicated region
    $region10: #{tpu_custom_call.1} parent=1 // pred_check
      _
    $region11: #{tpu_custom_call.1} parent=1 // pred_check_branch
      %36 = sbr.rel (0) target = $region13
    $region12: #{tpu_custom_call.1} parent=1 // pred_region
      _
    $region13: #{tpu_custom_call.1} parent=1 // pred_fallthru
      _
    // Predicated region
    $region14: #{tpu_custom_call.1} parent=1 // pred_check
      _
    $region15: #{tpu_custom_call.1} parent=1 // pred_check_branch
      %38 = sbr.rel (0) target = $region17
    $region16: #{tpu_custom_call.1} parent=1 // pred_region
      %s40 = ssub.s32 2048, 2048
      %41 = vsyncadd [#allocation6], %s40
      %s42 = sshll.u32 [#allocation7], 4
      %s43 = int_to_ptr.vmem [resolvable:$true] %s42
      %48 = dma.hbm_to_vmem [thread:$0]  %s3, 2048, %s43, [#allocation6], 128, 128, 8
    $region17: #{tpu_custom_call.1} parent=1 // pred_fallthru
      _
    // Predicated region
    $region18: #{tpu_custom_call.1} parent=1 // pred_check
      _
    $region19: #{tpu_custom_call.1} parent=1 // pred_check_branch
      %50 = sbr.rel (0) target = $region21
    $region20: #{tpu_custom_call.1} parent=1 // pred_region
      _
    $region21: #{tpu_custom_call.1} parent=1 // pred_fallthru
      _
    // Predicated region
    $region22: #{tpu_custom_call.1} parent=1 // pred_check
      _
    $region23: #{tpu_custom_call.1} parent=1 // pred_check_branch
      %52 = sbr.rel (0) target = $region25
    $region24: #{tpu_custom_call.1} parent=1 // pred_region
      %53 = dma.done [#allocation3], 128
    $region25: #{tpu_custom_call.1} parent=1 // pred_fallthru
      _
    // Predicated region
    $region26: #{tpu_custom_call.1} parent=1 // pred_check
      _
    $region27: #{tpu_custom_call.1} parent=1 // pred_check_branch
      %55 = sbr.rel (0) target = $region29
    $region28: #{tpu_custom_call.1} parent=1 // pred_region
      %56 = dma.done [#allocation6], 2048
    $region29: #{tpu_custom_call.1} parent=1 // pred_fallthru
      _
    // Predicated region
    $region30: #{tpu_custom_call.1} parent=1 // pred_check
      _
    $region31: #{tpu_custom_call.1} parent=1 // pred_check_branch
      %58 = sbr.rel (0) target = $region33
    $region32: #{tpu_custom_call.1} parent=1 // pred_region
      %59 = dma.done [#allocation6], 2048
    $region33: #{tpu_custom_call.1} parent=1 // pred_fallthru
      _
    %v60 = vld [vmem:[#allocation2] sm:$0xff]
    %v61 = vld [vmem:[#allocation5] sm:$0xff]
    %v62 = vld [vmem:[#allocation5 + $0x8] sm:$0xff]
    %v63 = vld [vmem:[#allocation5 + $0x10] sm:$0xff]
    %v64 = vld [vmem:[#allocation5 + $0x18] sm:$0xff]
    %v65 = vld [vmem:[#allocation5 + $0x20] sm:$0xff]
    %v66 = vld [vmem:[#allocation5 + $0x28] sm:$0xff]
    %v67 = vld [vmem:[#allocation5 + $0x30] sm:$0xff]
    %v68 = vld [vmem:[#allocation5 + $0x38] sm:$0xff]
    %v69 = vld [vmem:[#allocation5 + $0x40] sm:$0xff]
    %v70 = vld [vmem:[#allocation5 + $0x48] sm:$0xff]
    %v71 = vld [vmem:[#allocation5 + $0x50] sm:$0xff]
    %v72 = vld [vmem:[#allocation5 + $0x58] sm:$0xff]
    %v73 = vld [vmem:[#allocation5 + $0x60] sm:$0xff]
    %v74 = vld [vmem:[#allocation5 + $0x68] sm:$0xff]
    %v75 = vld [vmem:[#allocation5 + $0x70] sm:$0xff]
    %v76 = vld [vmem:[#allocation5 + $0x78] sm:$0xff]
    %v77 = vld [vmem:[%s2] sm:$0x1]
    %v79 = vlaneseq
    %v80 = vshrl.u32 %v79, 7
    %v81 = vsub.s32 0, %v80
    %v82 = vrot.slane %v77, %v81
    %84 = vmatprep.subr.mxu0 0.0
    %85 = vmatpush1.msra.mxu0 %v61
    %86 = vmatprep.subr.mxu0 0.0
    %87 = vmatpush1.msra.mxu0 %v62
    %88 = vmatprep.subr.mxu0 0.0
    %89 = vmatpush1.msra.mxu0 %v63
    %90 = vmatprep.subr.mxu0 0.0
    %91 = vmatpush1.msra.mxu0 %v64
    %92 = vmatprep.subr.mxu0 0.0
    %93 = vmatpush1.msra.mxu0 %v65
    %94 = vmatprep.subr.mxu0 0.0
    %95 = vmatpush1.msra.mxu0 %v66
    %96 = vmatprep.subr.mxu0 0.0
    %97 = vmatpush1.msra.mxu0 %v67
    %98 = vmatprep.subr.mxu0 0.0
    %99 = vmatpush1.msra.mxu0 %v68
    %100 = vmatprep.subr.mxu0 0.0
    %101 = vmatpush1.msra.mxu0 %v69
    %102 = vmatprep.subr.mxu0 0.0
    %103 = vmatpush1.msra.mxu0 %v70
    %104 = vmatprep.subr.mxu0 0.0
    %105 = vmatpush1.msra.mxu0 %v71
    %106 = vmatprep.subr.mxu0 0.0
    %107 = vmatpush1.msra.mxu0 %v72
    %108 = vmatprep.subr.mxu0 0.0
    %109 = vmatpush1.msra.mxu0 %v73
    %110 = vmatprep.subr.mxu0 0.0
    %111 = vmatpush1.msra.mxu0 %v74
    %112 = vmatprep.subr.mxu0 0.0
    %113 = vmatpush1.msra.mxu0 %v75
    %114 = vmatprep.subr.mxu0 0.0
    %115 = vmatpush1.msra.mxu0 %v76
    %116 = vmatprep.subr.mxu0 0.0
    %117 = vmatpush1.msra.mxu0 0.0
    %118 = vmatprep.subr.mxu0 0.0
    %119 = vmatpush1.msra.mxu0 0.0
    %120 = vmatprep.subr.mxu0 0.0
    %121 = vmatpush1.msra.mxu0 0.0
    %122 = vmatprep.subr.mxu0 0.0
    %123 = vmatpush1.msra.mxu0 0.0
    %124 = vmatprep.subr.mxu0 0.0
    %125 = vmatpush1.msra.mxu0 0.0
    %126 = vmatprep.subr.mxu0 0.0
    %127 = vmatpush1.msra.mxu0 0.0
    %128 = vmatprep.subr.mxu0 0.0
    %129 = vmatpush1.msra.mxu0 0.0
    %130 = vmatprep.subr.mxu0 0.0
    %131 = vmatpush1.msra.mxu0 0.0
    %132 = vmatprep.subr.mxu0 0.0
    %133 = vmatpush1.msra.mxu0 0.0
    %134 = vmatprep.subr.mxu0 0.0
    %135 = vmatpush1.msra.mxu0 0.0
    %136 = vmatprep.subr.mxu0 0.0
    %137 = vmatpush1.msra.mxu0 0.0
    %138 = vmatprep.subr.mxu0 0.0
    %139 = vmatpush1.msra.mxu0 0.0
    %140 = vmatprep.subr.mxu0 0.0
    %141 = vmatpush1.msra.mxu0 0.0
    %142 = vmatprep.subr.mxu0 0.0
    %143 = vmatpush1.msra.mxu0 0.0
    %144 = vmatprep.subr.mxu0 0.0
    %145 = vmatpush1.msra.mxu0 0.0
    %146 = vmatprep.subr.mxu0 0.0
    %147 = vmatpush1.msra.mxu0 0.0
    %148 = vmatprep.mubr.f32.mxu0 0.0
    %149 = vmatmul.mubr.f32.gmra.mrb[0].mxu0 %v60
    %v150 = vpop.f32.mrb[0].mxu0
    %v151 = vadd.f32 %v82, %v150
    %v152 = vpop.f32.mrb[0].mxu0
    %153 = vdwg.mxu0
    %v154 = vmax.f32 %v151, 0.0
    %v155 = vand.u32 2147483647, %v151
    %v156 = vsub.f32 0.0, %v155
    %v157 = vmul.f32 %v156, 1.442695
    %v158 = vpow.pop %v157
    %v159 = vadd.f32 %v158, 1.0
    %v160 = vlog2.pop %v159
    %v161 = vmul.f32 %v160, 0.6931472
    %v162 = vmul.f32 -0.5, %v158
    %v163 = vadd.f32 %v162, 1.0
    %v164 = vmul.f32 %v163, %v158
    %v165 = vand.u32 2147483647, %v158
    %vm166 = vcmp.lt.f32.partialorder %v165, 0.0004427343
    %v167 = vsel %vm166, %v164, %v161
    %v168 = vadd.f32 %v154, %v167
    %v169 = vld [vmem:[#allocation7] sm:$0xff]
    %v170 = vld [vmem:[#allocation7 + $0x8] sm:$0xff]
    %v171 = vld [vmem:[#allocation7 + $0x10] sm:$0xff]
    %v172 = vld [vmem:[#allocation7 + $0x18] sm:$0xff]
    %v173 = vld [vmem:[#allocation7 + $0x20] sm:$0xff]
    %v174 = vld [vmem:[#allocation7 + $0x28] sm:$0xff]
    %v175 = vld [vmem:[#allocation7 + $0x30] sm:$0xff]
    %v176 = vld [vmem:[#allocation7 + $0x38] sm:$0xff]
    %v177 = vld [vmem:[#allocation7 + $0x40] sm:$0xff]
    %v178 = vld [vmem:[#allocation7 + $0x48] sm:$0xff]
    %v179 = vld [vmem:[#allocation7 + $0x50] sm:$0xff]
    %v180 = vld [vmem:[#allocation7 + $0x58] sm:$0xff]
    %v181 = vld [vmem:[#allocation7 + $0x60] sm:$0xff]
    %v182 = vld [vmem:[#allocation7 + $0x68] sm:$0xff]
    %v183 = vld [vmem:[#allocation7 + $0x70] sm:$0xff]
    %v184 = vld [vmem:[#allocation7 + $0x78] sm:$0xff]
    %v185 = vld [vmem:[%s4] sm:$0x1]
    %v187 = vlaneseq
    %v188 = vshrl.u32 %v187, 7
    %v189 = vsub.s32 0, %v188
    %v190 = vrot.slane %v185, %v189
    %192 = vmatprep.subr.mxu0 0.0
    %193 = vmatpush1.msra.mxu0 %v169
    %194 = vmatprep.subr.mxu0 0.0
    %195 = vmatpush1.msra.mxu0 %v170
    %196 = vmatprep.subr.mxu0 0.0
    %197 = vmatpush1.msra.mxu0 %v171
    %198 = vmatprep.subr.mxu0 0.0
    %199 = vmatpush1.msra.mxu0 %v172
    %200 = vmatprep.subr.mxu0 0.0
    %201 = vmatpush1.msra.mxu0 %v173
    %202 = vmatprep.subr.mxu0 0.0
    %203 = vmatpush1.msra.mxu0 %v174
    %204 = vmatprep.subr.mxu0 0.0
    %205 = vmatpush1.msra.mxu0 %v175
    %206 = vmatprep.subr.mxu0 0.0
    %207 = vmatpush1.msra.mxu0 %v176
    %208 = vmatprep.subr.mxu0 0.0
    %209 = vmatpush1.msra.mxu0 %v177
    %210 = vmatprep.subr.mxu0 0.0
    %211 = vmatpush1.msra.mxu0 %v178
    %212 = vmatprep.subr.mxu0 0.0
    %213 = vmatpush1.msra.mxu0 %v179
    %214 = vmatprep.subr.mxu0 0.0
    %215 = vmatpush1.msra.mxu0 %v180
    %216 = vmatprep.subr.mxu0 0.0
    %217 = vmatpush1.msra.mxu0 %v181
    %218 = vmatprep.subr.mxu0 0.0
    %219 = vmatpush1.msra.mxu0 %v182
    %220 = vmatprep.subr.mxu0 0.0
    %221 = vmatpush1.msra.mxu0 %v183
    %222 = vmatprep.subr.mxu0 0.0
    %223 = vmatpush1.msra.mxu0 %v184
    %224 = vmatprep.subr.mxu0 0.0
    %225 = vmatpush1.msra.mxu0 0.0
    %226 = vmatprep.subr.mxu0 0.0
    %227 = vmatpush1.msra.mxu0 0.0
    %228 = vmatprep.subr.mxu0 0.0
    %229 = vmatpush1.msra.mxu0 0.0
    %230 = vmatprep.subr.mxu0 0.0
    %231 = vmatpush1.msra.mxu0 0.0
    %232 = vmatprep.subr.mxu0 0.0
    %233 = vmatpush1.msra.mxu0 0.0
    %234 = vmatprep.subr.mxu0 0.0
    %235 = vmatpush1.msra.mxu0 0.0
    %236 = vmatprep.subr.mxu0 0.0
    %237 = vmatpush1.msra.mxu0 0.0
    %238 = vmatprep.subr.mxu0 0.0
    %239 = vmatpush1.msra.mxu0 0.0
    %240 = vmatprep.subr.mxu0 0.0
    %241 = vmatpush1.msra.mxu0 0.0
    %242 = vmatprep.subr.mxu0 0.0
    %243 = vmatpush1.msra.mxu0 0.0
    %244 = vmatprep.subr.mxu0 0.0
    %245 = vmatpush1.msra.mxu0 0.0
    %246 = vmatprep.subr.mxu0 0.0
    %247 = vmatpush1.msra.mxu0 0.0
    %248 = vmatprep.subr.mxu0 0.0
    %249 = vmatpush1.msra.mxu0 0.0
    %250 = vmatprep.subr.mxu0 0.0
    %251 = vmatpush1.msra.mxu0 0.0
    %252 = vmatprep.subr.mxu0 0.0
    %253 = vmatpush1.msra.mxu0 0.0
    %254 = vmatprep.subr.mxu0 0.0
    %255 = vmatpush1.msra.mxu0 0.0
    %256 = vmatprep.mubr.f32.mxu0 0.0
    %257 = vmatmul.mubr.f32.gmra.mrb[0].mxu0 %v168
    %v258 = vpop.f32.mrb[0].mxu0
    %v259 = vadd.f32 %v190, %v258
    %v260 = vpop.f32.mrb[0].mxu0
    %261 = vdwg.mxu0
    %v262 = vlaneseq
    %v263 = vand.u32 %v262, 127
    %vm264 = vcmp.ge.s32.totalorder %v263, 16
    %vm265 = vcmp.lt.s32.totalorder %v263, 32
    %vm266 = vmand %vm264, %vm265
    %v267 = vmul.f32 %v259, 1.442695
    %v268 = vpow.pop %v267
    %v269 = vsel %vm266, %v268, %v259
    %270 = vst [vmem:[#allocation8] sm:$0xff] %v269
    // Predicated region
    $region34: #{tpu_custom_call.1} parent=1 // pred_check
      _
    $region35: #{tpu_custom_call.1} parent=1 // pred_check_branch
      %272 = sbr.rel (0) target = $region37
    $region36: #{tpu_custom_call.1} parent=1 // pred_region
      %s274 = ssub.s32 128, 128
      %275 = vsyncadd [#allocation4], %s274
      %s277 = sshll.u32 [#allocation8], 4
      %s278 = int_to_ptr.vmem [resolvable:$true] %s277
      %280 = dma.vmem_to_hbm [thread:$0]  %s278, 128, %s5, [#allocation4]
    $region37: #{tpu_custom_call.1} parent=1 // pred_fallthru
      _
    // Predicated region
    $region38: #{tpu_custom_call.1} parent=1 // pred_check
      _
    $region39: #{tpu_custom_call.1} parent=1 // pred_check_branch
      %282 = sbr.rel (0) target = $region41
    $region40: #{tpu_custom_call.1} parent=1 // pred_region
      %283 = dma.done [#allocation4], 128
    $region41: #{tpu_custom_call.1} parent=1 // pred_fallthru
      _
    %284 = vsyncpa [#allocation3], 1
    %285 = vsyncpa [#allocation6], 1
    %286 = vsyncpa [#allocation4], 1

</llo_original>
